<compile_context>
chip_gen: v7x
topology: tpu7x:2x2x1
jax: 0.10.0
libtpu: 0.0.40
codegen_flags: <defaults>
</compile_context>

<pallas_src>
import functools

import jax
import jax.numpy as jnp
from jax.experimental import pallas as pl
from jax.experimental.pallas import tpu as pltpu

LOG_SIGMA_MAX = 2.0
LOG_SIGMA_MIN = -10.0


def _softplus(z):
    # numerically stable softplus, same math as F.softplus
    return jnp.maximum(z, 0.0) + jnp.log1p(jnp.exp(-jnp.abs(z)))


def _round_up(x, m):
    return (x + m - 1) // m * m


def sac_actor_kernel(state_ref, goal_ref, eps_ref,        # (TB,S), (TB,G), (TB,A) f32
                     w1_ref, b1_ref,                      # (S+G,H) bf16, (1,H) f32
                     w2_ref, b2_ref,                      # (H,H)  bf16, (1,H) f32
                     whead_ref, bhead_ref,                # fused [mu|sigma]: (H,2A) bf16, (1,2A) f32
                     center_ref, range_ref,               # (1,A) f32
                     out_ref,                             # (TB, A+1) f32 = [action | logp]
                     xcat_ref):                           # VMEM scratch (TB, S+G) f32
    S = state_ref.shape[1]
    A = eps_ref.shape[1]

    # ---- single layer-1 dot: pack [state | goal] into one VMEM scratch ----
    xcat_ref[:, :S] = state_ref[...]
    xcat_ref[:, S:] = goal_ref[...]

    h1 = jnp.dot(xcat_ref[...].astype(jnp.bfloat16), w1_ref[...],
                 preferred_element_type=jnp.float32) + b1_ref[...]
    h1 = jnp.maximum(h1, 0.0)

    h2 = jnp.dot(h1.astype(jnp.bfloat16), w2_ref[...],
                 preferred_element_type=jnp.float32) + b2_ref[...]
    h2 = jnp.maximum(h2, 0.0)

    # ---- fused policy heads: one (H, 2A) matmul, split columns ----
    head = jnp.dot(h2.astype(jnp.bfloat16), whead_ref[...],
                   preferred_element_type=jnp.float32) + bhead_ref[...]
    mu = head[:, :A]
    log_std_raw = head[:, A:]

    log_std = LOG_SIGMA_MIN + (LOG_SIGMA_MAX - LOG_SIGMA_MIN) * (jnp.tanh(log_std_raw) + 1.0) * 0.5
    std = jnp.exp(log_std)

    # ---- rsample ----
    eps = eps_ref[...]
    a = mu + std * eps

    # Normal(mu, std).log_prob(a): (a - mu)/std == eps exactly
    lp = -0.5 * eps * eps - log_std - 0.5 * jnp.log(2.0 * jnp.pi)
    # tanh-squash correction: 2*(log 2 - a - softplus(-2a)); single fused row reduction
    corr = 2.0 * (jnp.log(2.0) - a - _softplus(-2.0 * a))
    lp_sum = jnp.sum(lp - corr, axis=-1, keepdims=True)

    out_ref[:, :A] = center_ref[...] + jnp.tanh(a) * range_ref[...]
    out_ref[:, A:] = lp_sum


def prepare_sac_actor_params(params, action_low, action_high):
    """One-time weight preparation: bf16 casts, fused head, bias reshapes, action bounds."""
    H = params["w1"].shape[1]
    A = params["wmu"].shape[1]
    action_low = jnp.asarray(action_low, jnp.float32)
    action_high = jnp.asarray(action_high, jnp.float32)
    return dict(
        w1=params["w1"].astype(jnp.bfloat16),                                   # (S+G, H)
        b1=params["b1"].reshape(1, H).astype(jnp.float32),
        w2=params["w2"].astype(jnp.bfloat16),                                   # (H, H)
        b2=params["b2"].reshape(1, H).astype(jnp.float32),
        whead=jnp.concatenate([params["wmu"], params["wsig"]], axis=1).astype(jnp.bfloat16),
        bhead=jnp.concatenate([params["bmu"], params["bsig"]], axis=0).reshape(1, 2 * A).astype(jnp.float32),
        center=((action_high + action_low) * 0.5).reshape(1, A).astype(jnp.float32),
        arange=((action_high - action_low) * 0.5).reshape(1, A).astype(jnp.float32),
    )


def sac_actor_forward(state, goal, eps, prepared):
    """Calls the Pallas kernel. `prepared` comes from prepare_sac_actor_params (cached)."""
    state = state.astype(jnp.float32)
    goal = goal.astype(jnp.float32)
    eps = eps.astype(jnp.float32)

    B, S = state.shape
    G = goal.shape[1]
    SG, H = prepared["w1"].shape
    A = prepared["center"].shape[1]

    # Batch tile: large tiles to minimize grid-step overhead on 1-TC chips (v5e/v6e),
    # but at least 2 tiles once B >= 16 so the "parallel" batch axis can shard across
    # v7x's two TensorCores.  TB <= 2048 keeps per-step VMEM well inside v5e's 16 MiB
    # scoped default (h1/h2 f32 + bf16 casts ~ 6 MiB at TB=2048).
    if B >= 16:
        TB = min(2048, _round_up(pl.cdiv(B, 2), 8))
    else:
        TB = B
    grid = (pl.cdiv(B, TB),)

    # Advisory cost estimate so XLA schedules the tiny custom call realistically.
    flops = int(2 * B * (SG * H + H * H + H * 2 * A))
    transcendentals = int(6 * B * A)
    bytes_accessed = int(
        2 * (SG * H + H * H + H * 2 * A)          # bf16 weights
        + 4 * (2 * H + 2 * A + 2 * A)             # f32 biases + action bounds
        + 4 * B * (S + G + A)                     # activations + eps in
        + 4 * B * (A + 1)                         # packed output
    )
    cost = pl.CostEstimate(flops=flops, transcendentals=transcendentals,
                           bytes_accessed=bytes_accessed)

    # Weights/biases: constant index_map -> VMEM-resident across grid steps.
    wspec = lambda shp: pl.BlockSpec(shp, lambda i: (0, 0))

    out = pl.pallas_call(
        sac_actor_kernel,
        out_shape=jax.ShapeDtypeStruct((B, A + 1), jnp.float32),
        grid_spec=pltpu.PrefetchScalarGridSpec(
            num_scalar_prefetch=0,
            grid=grid,
            in_specs=[
                pl.BlockSpec((TB, S), lambda i: (i, 0)),    # state
                pl.BlockSpec((TB, G), lambda i: (i, 0)),    # goal
                pl.BlockSpec((TB, A), lambda i: (i, 0)),    # eps ~ N(0,1)
                wspec((SG, H)),                             # w1 (full, single dot)
                wspec((1, H)),                              # b1
                wspec((H, H)),                              # w2
                wspec((1, H)),                              # b2
                wspec((H, 2 * A)),                          # fused head weight
                wspec((1, 2 * A)),                          # fused head bias
                wspec((1, A)),                              # action center
                wspec((1, A)),                              # action range
            ],
            out_specs=pl.BlockSpec((TB, A + 1), lambda i: (i, 0)),
            scratch_shapes=[pltpu.VMEM((TB, SG), jnp.float32)],
        ),
        compiler_params=pltpu.CompilerParams(
            dimension_semantics=("parallel",),      # batch axis shards across v7x's 2 TCs
        ),
        cost_estimate=cost,
    )(state, goal, eps,
      prepared["w1"], prepared["b1"], prepared["w2"], prepared["b2"],
      prepared["whead"], prepared["bhead"], prepared["center"], prepared["arange"])

    return out[:, :A], out[:, A]


def sac_actor_reference(state, goal, eps, params, action_low, action_high):
    """Pure-JAX reference with the same bf16 weight/activation casting as the kernel."""
    f32 = jnp.float32
    bf = lambda w: w.astype(jnp.bfloat16).astype(f32)
    x = jnp.concatenate([state, goal], axis=-1).astype(jnp.bfloat16).astype(f32)
    h = jax.nn.relu(x @ bf(params["w1"]) + params["b1"])
    h = jax.nn.relu(h.astype(jnp.bfloat16).astype(f32) @ bf(params["w2"]) + params["b2"])
    hb = h.astype(jnp.bfloat16).astype(f32)
    mu = hb @ bf(params["wmu"]) + params["bmu"]
    ls = hb @ bf(params["wsig"]) + params["bsig"]
    ls = LOG_SIGMA_MIN + (LOG_SIGMA_MAX - LOG_SIGMA_MIN) * (jnp.tanh(ls) + 1.0) * 0.5
    std = jnp.exp(ls)
    a = mu + std * eps
    lp = jnp.sum(-0.5 * eps * eps - ls - 0.5 * jnp.log(2.0 * jnp.pi), axis=-1)
    lp = lp - jnp.sum(2.0 * (jnp.log(2.0) - a - jax.nn.softplus(-2.0 * a)), axis=-1)
    center = (action_high + action_low) * 0.5
    arange = (action_high - action_low) * 0.5
    return center + jnp.tanh(a) * arange, lp


def _linear_init(key, fan_in, fan_out):
    """torch.nn.Linear default init U[-1/sqrt(fan_in), 1/sqrt(fan_in)]."""
    kw, kb = jax.random.split(key)
    bound = 1.0 / jnp.sqrt(fan_in)
    w = jax.random.uniform(kw, (fan_in, fan_out), jnp.float32, -bound, bound)
    b = jax.random.uniform(kb, (fan_out,), jnp.float32, -bound, bound)
    return w, b


if __name__ == "__main__":
    # Small shapes consistent with the module (hidden=256 fixed by SacActor.__init__)
    B = 8
    STATE = 12
    GOAL = 4
    ACTION = 4
    HIDDEN = 256

    root = jax.random.PRNGKey(0)
    ks = jax.random.split(root, 8)

    w1, b1 = _linear_init(ks[0], STATE + GOAL, HIDDEN)
    w2, b2 = _linear_init(ks[1], HIDDEN, HIDDEN)
    wmu, bmu = _linear_init(ks[2], HIDDEN, ACTION)
    wsig, bsig = _linear_init(ks[3], HIDDEN, ACTION)
    params = dict(w1=w1, b1=b1, w2=w2, b2=b2, wmu=wmu, bmu=bmu, wsig=wsig, bsig=bsig)

    state = jax.random.normal(ks[4], (B, STATE), jnp.float32)
    goal = jax.random.normal(ks[5], (B, GOAL), jnp.float32)
    eps = jax.random.normal(ks[6], (B, ACTION), jnp.float32)   # rsample noise

    action_low = -2.0 * jnp.ones((ACTION,), jnp.float32)
    action_high = 2.0 * jnp.ones((ACTION,), jnp.float32)

    # One-time weight prep (hoisted out of the per-call path), jitted forward.
    prepared = prepare_sac_actor_params(params, action_low, action_high)
    fwd = jax.jit(sac_actor_forward)

    actions, log_prob = fwd(state, goal, eps, prepared)
    jax.block_until_ready((actions, log_prob))

    assert actions.shape == (B, ACTION)
    assert log_prob.shape == (B,)
    assert bool(jnp.all(jnp.isfinite(actions)))
    assert bool(jnp.all(jnp.isfinite(log_prob)))
    # squashed actions must lie inside [action_low, action_high]
    assert bool(jnp.all(actions <= 2.0 + 1e-5)) and bool(jnp.all(actions >= -2.0 - 1e-5))

    # Compare against a bf16-weight JAX reference (loose tolerance: MXU accumulation order).
    ref_act, ref_lp = sac_actor_reference(state, goal, eps, params, action_low, action_high)
    assert bool(jnp.all(jnp.abs(actions - ref_act) < 2e-2))
    assert bool(jnp.all(jnp.abs(log_prob - ref_lp) < 5e-2))

    print("KERNEL_OK")
</pallas_src>

<mosaic_0001>
module attributes {stable_mosaic.version = 11 : i64} {
  func.func @sac_actor_kernel(%arg0: i32, %arg1: memref<8x12xf32, #tpu.memory_space<vmem>>, %arg2: memref<8x4xf32, #tpu.memory_space<vmem>>, %arg3: memref<8x4xf32, #tpu.memory_space<vmem>>, %arg4: memref<16x256xbf16, #tpu.memory_space<vmem>>, %arg5: memref<1x256xf32, #tpu.memory_space<vmem>>, %arg6: memref<256x256xbf16, #tpu.memory_space<vmem>>, %arg7: memref<1x256xf32, #tpu.memory_space<vmem>>, %arg8: memref<256x8xbf16, #tpu.memory_space<vmem>>, %arg9: memref<1x8xf32, #tpu.memory_space<vmem>>, %arg10: memref<1x4xf32, #tpu.memory_space<vmem>>, %arg11: memref<1x4xf32, #tpu.memory_space<vmem>>, %arg12: memref<8x5xf32, #tpu.memory_space<vmem>>, %arg13: memref<8x16xf32, #tpu.memory_space<vmem>>) attributes {dimension_semantics = [#tpu.dimension_semantics<parallel>], iteration_bounds = array<i64: 1>, scalar_prefetch = 0 : i64, scratch_operands = 1 : i64, tpu.core_type = #tpu.core_type<tc>, window_params = [{transform_indices = @transform_0, window_bounds = array<i64: 8, 12>}, {transform_indices = @transform_1, window_bounds = array<i64: 8, 4>}, {transform_indices = @transform_2, window_bounds = array<i64: 8, 4>}, {pipeline_mode = #tpu.pipeline_mode<synchronous>, transform_indices = @transform_3, window_bounds = array<i64: 16, 256>}, {pipeline_mode = #tpu.pipeline_mode<synchronous>, transform_indices = @transform_4, window_bounds = array<i64: 1, 256>}, {pipeline_mode = #tpu.pipeline_mode<synchronous>, transform_indices = @transform_5, window_bounds = array<i64: 256, 256>}, {pipeline_mode = #tpu.pipeline_mode<synchronous>, transform_indices = @transform_6, window_bounds = array<i64: 1, 256>}, {pipeline_mode = #tpu.pipeline_mode<synchronous>, transform_indices = @transform_7, window_bounds = array<i64: 256, 8>}, {pipeline_mode = #tpu.pipeline_mode<synchronous>, transform_indices = @transform_8, window_bounds = array<i64: 1, 8>}, {pipeline_mode = #tpu.pipeline_mode<synchronous>, transform_indices = @transform_9, window_bounds = array<i64: 1, 4>}, {pipeline_mode = #tpu.pipeline_mode<synchronous>, transform_indices = @transform_10, window_bounds = array<i64: 1, 4>}, {transform_indices = @transform_11, window_bounds = array<i64: 8, 5>}]} {
    %c0 = arith.constant 0 : index
    %c0_0 = arith.constant 0 : index
    %0 = vector.load %arg1[%c0, %c0_0] : memref<8x12xf32, #tpu.memory_space<vmem>>, vector<8x12xf32>
    %c0_1 = arith.constant 0 : index
    %c0_2 = arith.constant 0 : index
    %1 = vector.load %arg13[%c0_1, %c0_2] : memref<8x16xf32, #tpu.memory_space<vmem>>, vector<8x12xf32>
    tpu.vector_store %arg13[%c0_1, %c0_2], %0 {strides = array<i32>} : memref<8x16xf32, #tpu.memory_space<vmem>>, vector<8x12xf32>,
    %c0_3 = arith.constant 0 : index
    %c0_4 = arith.constant 0 : index
    %2 = vector.load %arg2[%c0_3, %c0_4] : memref<8x4xf32, #tpu.memory_space<vmem>>, vector<8x4xf32>
    %c0_5 = arith.constant 0 : index
    %c12 = arith.constant 12 : index
    %3 = vector.load %arg13[%c0_5, %c12] : memref<8x16xf32, #tpu.memory_space<vmem>>, vector<8x4xf32>
    tpu.vector_store %arg13[%c0_5, %c12], %2 {strides = array<i32>} : memref<8x16xf32, #tpu.memory_space<vmem>>, vector<8x4xf32>,
    %c0_6 = arith.constant 0 : index
    %c0_7 = arith.constant 0 : index
    %4 = vector.load %arg13[%c0_6, %c0_7] : memref<8x16xf32, #tpu.memory_space<vmem>>, vector<8x16xf32>
    %5 = arith.truncf %4 : vector<8x16xf32> to vector<8x16xbf16>
    %c0_8 = arith.constant 0 : index
    %c0_9 = arith.constant 0 : index
    %6 = vector.load %arg4[%c0_8, %c0_9] : memref<16x256xbf16, #tpu.memory_space<vmem>>, vector<16x256xbf16>
    %cst = arith.constant dense<0.000000e+00> : vector<8x256xf32>
    %7 = tpu.matmul %5, %6, %cst {dimension_numbers = #tpu.dot_dimension_numbers<[1], [0], [0], [1], [0, 0, 1, 1], [], []>} : vector<8x16xbf16>, vector<16x256xbf16>, vector<8x256xf32> -> vector<8x256xf32>
    %c0_10 = arith.constant 0 : index
    %c0_11 = arith.constant 0 : index
    %8 = vector.load %arg5[%c0_10, %c0_11] : memref<1x256xf32, #tpu.memory_space<vmem>>, vector<1x256xf32>
    %9 = vector.broadcast %8 : vector<1x256xf32> to vector<8x256xf32>
    %10 = arith.addf %7, %9 : vector<8x256xf32>
    %cst_12 = arith.constant 0.000000e+00 : f32
    %11 = vector.broadcast %cst_12 : f32 to vector<8x256xf32>
    %12 = arith.maximumf %10, %11 : vector<8x256xf32>
    %13 = arith.truncf %12 : vector<8x256xf32> to vector<8x256xbf16>
    %c0_13 = arith.constant 0 : index
    %c0_14 = arith.constant 0 : index
    %14 = vector.load %arg6[%c0_13, %c0_14] : memref<256x256xbf16, #tpu.memory_space<vmem>>, vector<256x256xbf16>
    %cst_15 = arith.constant dense<0.000000e+00> : vector<8x256xf32>
    %15 = tpu.matmul %13, %14, %cst_15 {dimension_numbers = #tpu.dot_dimension_numbers<[1], [0], [0], [1], [0, 0, 1, 1], [], []>} : vector<8x256xbf16>, vector<256x256xbf16>, vector<8x256xf32> -> vector<8x256xf32>
    %c0_16 = arith.constant 0 : index
    %c0_17 = arith.constant 0 : index
    %16 = vector.load %arg7[%c0_16, %c0_17] : memref<1x256xf32, #tpu.memory_space<vmem>>, vector<1x256xf32>
    %17 = vector.broadcast %16 : vector<1x256xf32> to vector<8x256xf32>
    %18 = arith.addf %15, %17 : vector<8x256xf32>
    %cst_18 = arith.constant 0.000000e+00 : f32
    %19 = vector.broadcast %cst_18 : f32 to vector<8x256xf32>
    %20 = arith.maximumf %18, %19 : vector<8x256xf32>
    %21 = arith.truncf %20 : vector<8x256xf32> to vector<8x256xbf16>
    %c0_19 = arith.constant 0 : index
    %c0_20 = arith.constant 0 : index
    %22 = vector.load %arg8[%c0_19, %c0_20] : memref<256x8xbf16, #tpu.memory_space<vmem>>, vector<256x8xbf16>
    %cst_21 = arith.constant dense<0.000000e+00> : vector<8x8xf32>
    %23 = tpu.matmul %21, %22, %cst_21 {dimension_numbers = #tpu.dot_dimension_numbers<[1], [0], [0], [1], [0, 0, 1, 1], [], []>} : vector<8x256xbf16>, vector<256x8xbf16>, vector<8x8xf32> -> vector<8x8xf32>
    %c0_22 = arith.constant 0 : index
    %c0_23 = arith.constant 0 : index
    %24 = vector.load %arg9[%c0_22, %c0_23] : memref<1x8xf32, #tpu.memory_space<vmem>>, vector<1x8xf32>
    %25 = vector.broadcast %24 : vector<1x8xf32> to vector<8x8xf32>
    %26 = arith.addf %23, %25 : vector<8x8xf32>
    %27 = vector.extract_strided_slice %26 {offsets = [0, 0], sizes = [8, 4], strides = [1, 1]} : vector<8x8xf32> to vector<8x4xf32>
    %28 = vector.extract_strided_slice %26 {offsets = [0, 4], sizes = [8, 4], strides = [1, 1]} : vector<8x8xf32> to vector<8x4xf32>
    %29 = math.tanh %28 : vector<8x4xf32>
    %cst_24 = arith.constant 1.000000e+00 : f32
    %30 = vector.broadcast %cst_24 : f32 to vector<8x4xf32>
    %31 = arith.addf %29, %30 : vector<8x4xf32>
    %cst_25 = arith.constant 1.200000e+01 : f32
    %32 = vector.broadcast %cst_25 : f32 to vector<8x4xf32>
    %33 = arith.mulf %32, %31 : vector<8x4xf32>
    %cst_26 = arith.constant 5.000000e-01 : f32
    %34 = vector.broadcast %cst_26 : f32 to vector<8x4xf32>
    %35 = arith.mulf %33, %34 : vector<8x4xf32>
    %cst_27 = arith.constant -1.000000e+01 : f32
    %36 = vector.broadcast %cst_27 : f32 to vector<8x4xf32>
    %37 = arith.addf %36, %35 : vector<8x4xf32>
    %38 = math.exp %37 : vector<8x4xf32>
    %c0_28 = arith.constant 0 : index
    %c0_29 = arith.constant 0 : index
    %39 = vector.load %arg3[%c0_28, %c0_29] : memref<8x4xf32, #tpu.memory_space<vmem>>, vector<8x4xf32>
    %40 = arith.mulf %38, %39 : vector<8x4xf32>
    %41 = arith.addf %27, %40 : vector<8x4xf32>
    %cst_30 = arith.constant -5.000000e-01 : f32
    %42 = vector.broadcast %cst_30 : f32 to vector<8x4xf32>
    %43 = arith.mulf %42, %39 : vector<8x4xf32>
    %44 = arith.mulf %43, %39 : vector<8x4xf32>
    %45 = arith.subf %44, %37 : vector<8x4xf32>
    %cst_31 = arith.constant 6.28318548 : f32
    %46 = math.log %cst_31 : f32
    %cst_32 = arith.constant 5.000000e-01 : f32
    %47 = arith.mulf %cst_32, %46 : f32
    %48 = vector.broadcast %47 : f32 to vector<8x4xf32>
    %49 = arith.subf %45, %48 : vector<8x4xf32>
    %cst_33 = arith.constant 2.000000e+00 : f32
    %50 = math.log %cst_33 : f32
    %51 = vector.broadcast %50 : f32 to vector<8x4xf32>
    %52 = arith.subf %51, %41 : vector<8x4xf32>
    %cst_34 = arith.constant -2.000000e+00 : f32
    %53 = vector.broadcast %cst_34 : f32 to vector<8x4xf32>
    %54 = arith.mulf %53, %41 : vector<8x4xf32>
    %cst_35 = arith.constant 0.000000e+00 : f32
    %55 = vector.broadcast %cst_35 : f32 to vector<8x4xf32>
    %56 = arith.maximumf %54, %55 : vector<8x4xf32>
    %57 = math.absf %54 : vector<8x4xf32>
    %cst_36 = arith.constant 0.000000e+00 : f32
    %58 = vector.broadcast %cst_36 : f32 to vector<8x4xf32>
    %59 = arith.subf %58, %57 : vector<8x4xf32>
    %60 = math.exp %59 : vector<8x4xf32>
    %61 = math.log1p %60 : vector<8x4xf32>
    %62 = arith.addf %56, %61 : vector<8x4xf32>
    %63 = arith.subf %52, %62 : vector<8x4xf32>
    %cst_37 = arith.constant 2.000000e+00 : f32
    %64 = vector.broadcast %cst_37 : f32 to vector<8x4xf32>
    %65 = arith.mulf %64, %63 : vector<8x4xf32>
    %66 = arith.subf %49, %65 : vector<8x4xf32>
    %cst_38 = arith.constant dense<0.000000e+00> : vector<8xf32>
    %67 = vector.multi_reduction <add>, %66, %cst_38 [1] : vector<8x4xf32> to vector<8xf32>
    %68 = vector.shape_cast %67 : vector<8xf32> to vector<8x1xf32>
    %c0_39 = arith.constant 0 : index
    %c0_40 = arith.constant 0 : index
    %69 = vector.load %arg10[%c0_39, %c0_40] : memref<1x4xf32, #tpu.memory_space<vmem>>, vector<1x4xf32>
    %70 = math.tanh %41 : vector<8x4xf32>
    %c0_41 = arith.constant 0 : index
    %c0_42 = arith.constant 0 : index
    %71 = vector.load %arg11[%c0_41, %c0_42] : memref<1x4xf32, #tpu.memory_space<vmem>>, vector<1x4xf32>
    %72 = vector.broadcast %71 : vector<1x4xf32> to vector<8x4xf32>
    %73 = arith.mulf %70, %72 : vector<8x4xf32>
    %74 = vector.broadcast %69 : vector<1x4xf32> to vector<8x4xf32>
    %75 = arith.addf %74, %73 : vector<8x4xf32>
    %c0_43 = arith.constant 0 : index
    %c0_44 = arith.constant 0 : index
    %76 = vector.load %arg12[%c0_43, %c0_44] : memref<8x5xf32, #tpu.memory_space<vmem>>, vector<8x4xf32>
    tpu.vector_store %arg12[%c0_43, %c0_44], %75 {strides = array<i32>} : memref<8x5xf32, #tpu.memory_space<vmem>>, vector<8x4xf32>,
    %c0_45 = arith.constant 0 : index
    %c4 = arith.constant 4 : index
    %77 = vector.load %arg12[%c0_45, %c4] : memref<8x5xf32, #tpu.memory_space<vmem>>, vector<8x1xf32>
    tpu.vector_store %arg12[%c0_45, %c4], %68 {strides = array<i32>} : memref<8x5xf32, #tpu.memory_space<vmem>>, vector<8x1xf32>,
    return
  }
  func.func @transform_0(%arg0: i32) -> (i32, i32) {
    %c0_i32 = arith.constant 0 : i32
    %c0_i32_0 = arith.constant 0 : i32
    return %arg0, %c0_i32 : i32, i32
  }
  func.func @transform_1(%arg0: i32) -> (i32, i32) {
    %c0_i32 = arith.constant 0 : i32
    %c0_i32_0 = arith.constant 0 : i32
    return %arg0, %c0_i32 : i32, i32
  }
  func.func @transform_2(%arg0: i32) -> (i32, i32) {
    %c0_i32 = arith.constant 0 : i32
    %c0_i32_0 = arith.constant 0 : i32
    return %arg0, %c0_i32 : i32, i32
  }
  func.func @transform_3(%arg0: i32) -> (i32, i32) {
    %c0_i32 = arith.constant 0 : i32
    %c0_i32_0 = arith.constant 0 : i32
    %c0_i32_1 = arith.constant 0 : i32
    return %c0_i32, %c0_i32_0 : i32, i32
  }
  func.func @transform_4(%arg0: i32) -> (i32, i32) {
    %c0_i32 = arith.constant 0 : i32
    %c0_i32_0 = arith.constant 0 : i32
    %c0_i32_1 = arith.constant 0 : i32
    return %c0_i32, %c0_i32_0 : i32, i32
  }
  func.func @transform_5(%arg0: i32) -> (i32, i32) {
    %c0_i32 = arith.constant 0 : i32
    %c0_i32_0 = arith.constant 0 : i32
    %c0_i32_1 = arith.constant 0 : i32
    return %c0_i32, %c0_i32_0 : i32, i32
  }
  func.func @transform_6(%arg0: i32) -> (i32, i32) {
    %c0_i32 = arith.constant 0 : i32
    %c0_i32_0 = arith.constant 0 : i32
    %c0_i32_1 = arith.constant 0 : i32
    return %c0_i32, %c0_i32_0 : i32, i32
  }
  func.func @transform_7(%arg0: i32) -> (i32, i32) {
    %c0_i32 = arith.constant 0 : i32
    %c0_i32_0 = arith.constant 0 : i32
    %c0_i32_1 = arith.constant 0 : i32
    return %c0_i32, %c0_i32_0 : i32, i32
  }
  func.func @transform_8(%arg0: i32) -> (i32, i32) {
    %c0_i32 = arith.constant 0 : i32
    %c0_i32_0 = arith.constant 0 : i32
    %c0_i32_1 = arith.constant 0 : i32
    return %c0_i32, %c0_i32_0 : i32, i32
  }
  func.func @transform_9(%arg0: i32) -> (i32, i32) {
    %c0_i32 = arith.constant 0 : i32
    %c0_i32_0 = arith.constant 0 : i32
    %c0_i32_1 = arith.constant 0 : i32
    return %c0_i32, %c0_i32_0 : i32, i32
  }
  func.func @transform_10(%arg0: i32) -> (i32, i32) {
    %c0_i32 = arith.constant 0 : i32
    %c0_i32_0 = arith.constant 0 : i32
    %c0_i32_1 = arith.constant 0 : i32
    return %c0_i32, %c0_i32_0 : i32, i32
  }
  func.func @transform_11(%arg0: i32) -> (i32, i32) {
    %c0_i32 = arith.constant 0 : i32
    %c0_i32_0 = arith.constant 0 : i32
    return %arg0, %c0_i32 : i32, i32
  }
}

</mosaic_0001>

<llo_original>
// kernel: sac_actor_forward.1
$region0: #{sac_actor_forward.1}
  #allocation0 [shape = 'u32[]', space=smem, size = 0x4, offset = 0x4, fixed_abs, tag = 'smem constant byte address 0x4 - core index']
  #allocation1 [shape = 'u32[144,128]{1,0:T(1,128)}', space=vmem, size = 0x12000, scoped, tag = 'internal scratch']
  #allocation2 [shape = 'f32[8,16]{1,0:T(8,128)}', space=vmem, size = 0x1000, scoped, tag = 'scratch operand']
  %s0 = inlined_call_operand.vmem [shape: f32[8,12], index: 0, kind: input, shape index: {}]
  %s1 = inlined_call_operand.vmem [shape: f32[8,4], index: 1, kind: input, shape index: {}]
  %s2 = inlined_call_operand.vmem [shape: f32[8,4], index: 2, kind: input, shape index: {}]
  %s3 = inlined_call_operand.vmem [shape: bf16[16,256], index: 3, kind: input, shape index: {}]
  %s4 = inlined_call_operand.vmem [shape: f32[1,256], index: 4, kind: input, shape index: {}]
  %s5 = inlined_call_operand.hbm [shape: bf16[256,256], index: 5, kind: input, shape index: {}]
  %s6 = inlined_call_operand.vmem [shape: f32[1,256], index: 6, kind: input, shape index: {}]
  %s7 = inlined_call_operand.vmem [shape: bf16[256,8], index: 7, kind: input, shape index: {}]
  %s8 = inlined_call_operand.vmem [shape: f32[1,8], index: 8, kind: input, shape index: {}]
  %s9 = inlined_call_operand.vmem [shape: f32[1,4], index: 9, kind: input, shape index: {}]
  %s10 = inlined_call_operand.vmem [shape: f32[1,4], index: 10, kind: input, shape index: {}]
  %s11 = inlined_call_operand.vmem [shape: f32[8,5], index: 11, kind: output, shape index: {}]
  %s12 = sld [smem:[#allocation0]]
  $region58: #{sac_actor_forward.1} parent=0
    _
  %s14 = ssub.s32 1, %s12
  %s15 = scalar_select 0, %s14, %s12
  $region1: #{sac_actor_forward.1} parent=0
    #allocation3 [shape = 'u8[131072]{0}', space=vmem, size = 0x20000, scoped, tag = 'input window, operand 5, single buffered']
    #allocation4 [shape = 's32[1]{0}', space=sflag, size = 0x4, scoped, tag = 'scoped memory for sac_actor_forward.1']
    %16 = vsyncpa [#allocation4], 0
    // Predicated region
    $region2: #{sac_actor_forward.1} parent=1 // pred_check
      _
    $region3: #{sac_actor_forward.1} parent=1 // pred_check_branch
      %18 = sbr.rel (0) target = $region5
    $region4: #{sac_actor_forward.1} parent=1 // pred_region
      _
    $region5: #{sac_actor_forward.1} parent=1 // pred_fallthru
      _
    // Predicated region
    $region6: #{sac_actor_forward.1} parent=1 // pred_check
      _
    $region7: #{sac_actor_forward.1} parent=1 // pred_check_branch
      %20 = sbr.rel (0) target = $region9
    $region8: #{sac_actor_forward.1} parent=1 // pred_region
      _
    $region9: #{sac_actor_forward.1} parent=1 // pred_fallthru
      _
    // Predicated region
    $region10: #{sac_actor_forward.1} parent=1 // pred_check
      _
    $region11: #{sac_actor_forward.1} parent=1 // pred_check_branch
      %22 = sbr.rel (0) target = $region13
    $region12: #{sac_actor_forward.1} parent=1 // pred_region
      _
    $region13: #{sac_actor_forward.1} parent=1 // pred_fallthru
      _
    // Predicated region
    $region14: #{sac_actor_forward.1} parent=1 // pred_check
      _
    $region15: #{sac_actor_forward.1} parent=1 // pred_check_branch
      %24 = sbr.rel (0) target = $region17
    $region16: #{sac_actor_forward.1} parent=1 // pred_region
      _
    $region17: #{sac_actor_forward.1} parent=1 // pred_fallthru
      _
    // Predicated region
    $region18: #{sac_actor_forward.1} parent=1 // pred_check
      _
    $region19: #{sac_actor_forward.1} parent=1 // pred_check_branch
      %26 = sbr.rel (0) target = $region21
    $region20: #{sac_actor_forward.1} parent=1 // pred_region
      _
    $region21: #{sac_actor_forward.1} parent=1 // pred_fallthru
      _
    // Predicated region
    $region22: #{sac_actor_forward.1} parent=1 // pred_check
      _
    $region23: #{sac_actor_forward.1} parent=1 // pred_check_branch
      %28 = sbr.rel (0) target = $region25
    $region24: #{sac_actor_forward.1} parent=1 // pred_region
      %s30 = ssub.s32 4096, 4096
      %31 = vsyncadd [#allocation4], %s30
      %s32 = sshll.u32 [#allocation3], 4
      %s33 = int_to_ptr.vmem [resolvable:$true] %s32
      %38 = dma.hbm_to_vmem [thread:$0]  %s5, 4096, %s33, [#allocation4], 128, 128, 8
    $region25: #{sac_actor_forward.1} parent=1 // pred_fallthru
      _
    // Predicated region
    $region26: #{sac_actor_forward.1} parent=1 // pred_check
      _
    $region27: #{sac_actor_forward.1} parent=1 // pred_check_branch
      %40 = sbr.rel (0) target = $region29
    $region28: #{sac_actor_forward.1} parent=1 // pred_region
      _
    $region29: #{sac_actor_forward.1} parent=1 // pred_fallthru
      _
    // Predicated region
    $region30: #{sac_actor_forward.1} parent=1 // pred_check
      _
    $region31: #{sac_actor_forward.1} parent=1 // pred_check_branch
      %42 = sbr.rel (0) target = $region33
    $region32: #{sac_actor_forward.1} parent=1 // pred_region
      _
    $region33: #{sac_actor_forward.1} parent=1 // pred_fallthru
      _
    // Predicated region
    $region34: #{sac_actor_forward.1} parent=1 // pred_check
      _
    $region35: #{sac_actor_forward.1} parent=1 // pred_check_branch
      %44 = sbr.rel (0) target = $region37
    $region36: #{sac_actor_forward.1} parent=1 // pred_region
      _
    $region37: #{sac_actor_forward.1} parent=1 // pred_fallthru
      _
    // Predicated region
    $region38: #{sac_actor_forward.1} parent=1 // pred_check
      _
    $region39: #{sac_actor_forward.1} parent=1 // pred_check_branch
      %46 = sbr.rel (0) target = $region41
    $region40: #{sac_actor_forward.1} parent=1 // pred_region
      _
    $region41: #{sac_actor_forward.1} parent=1 // pred_fallthru
      _
    // Predicated region
    $region42: #{sac_actor_forward.1} parent=1 // pred_check
      _
    $region43: #{sac_actor_forward.1} parent=1 // pred_check_branch
      %48 = sbr.rel (0) target = $region45
    $region44: #{sac_actor_forward.1} parent=1 // pred_region
      _
    $region45: #{sac_actor_forward.1} parent=1 // pred_fallthru
      _
    // Predicated region
    $region46: #{sac_actor_forward.1} parent=1 // pred_check
      _
    $region47: #{sac_actor_forward.1} parent=1 // pred_check_branch
      %50 = sbr.rel (0) target = $region49
    $region48: #{sac_actor_forward.1} parent=1 // pred_region
      %51 = dma.done [#allocation4], 4096
    $region49: #{sac_actor_forward.1} parent=1 // pred_fallthru
      _
    %v53 = vld [vmem:[%s0] sm:$0xff]
    %vm54 = vcmask 97280
    %55 = vst.msk [vmem:[#allocation2] sm:$0xff] %vm54, %v53
    %v56 = vld [vmem:[%s1] sm:$0xff]
    %58 = vrot.lane.b32.xlu0 %v56, 12
    %v59 = vpop.permute.xlu0 %58
    %vm61 = vcmask 130144
    %62 = vst.msk [vmem:[#allocation2] sm:$0xff] %vm61, %v59
    %v63 = vld [vmem:[#allocation2] sm:$0xff]
    %v64 = vpack.c.bf16 %v63, %v63
    %v65 = vld [vmem:[%s3] sm:$0xff]
    %v66 = vld [vmem:[%s3 + $0x8] sm:$0xff]
    %v67 = vld [vmem:[%s4] sm:$0x3]
    %v69 = vlaneseq
    %v70 = vshrl.u32 %v69, 7
    %v71 = vsub.s32 0, %v70
    %v72 = vrot.slane %v67, %v71
    %v73 = vlaneseq
    %v74 = vshrl.u32 %v73, 7
    %v75 = vsub.s32 1, %v74
    %v76 = vrot.slane %v67, %v75
    %v81 = vunpack.c.l.b16 %v65
    %v82 = vunpack.c.h.b16 %v65
    %v83 = vunpack.c.l.b16 %v66
    %v84 = vunpack.c.h.b16 %v66
    %v85 = vpack.c.b16 %v83, %v81
    %v86 = vpack.c.b16 %v84, %v82
    %vm89 = vcmask 130048
    %v91 = vsel %vm89, %v64, 0
    %93 = vmatprep.subr.bf16.mxu0 %v86
    %94 = vmatpush1.bf16.msra.mxu0 %v85
    %95 = vmatprep.subr.bf16.mxu0 0
    %96 = vmatpush1.bf16.msra.mxu0 0
    %97 = vmatprep.subr.bf16.mxu0 0
    %98 = vmatpush1.bf16.msra.mxu0 0
    %99 = vmatprep.subr.bf16.mxu0 0
    %100 = vmatpush1.bf16.msra.mxu0 0
    %101 = vmatprep.subr.bf16.mxu0 0
    %102 = vmatpush1.bf16.msra.mxu0 0
    %103 = vmatprep.subr.bf16.mxu0 0
    %104 = vmatpush1.bf16.msra.mxu0 0
    %105 = vmatprep.subr.bf16.mxu0 0
    %106 = vmatpush1.bf16.msra.mxu0 0
    %107 = vmatprep.subr.bf16.mxu0 0
    %108 = vmatpush1.bf16.msra.mxu0 0
    %109 = vmatprep.subr.bf16.mxu0 0
    %110 = vmatpush1.bf16.msra.mxu0 0
    %111 = vmatprep.subr.bf16.mxu0 0
    %112 = vmatpush1.bf16.msra.mxu0 0
    %113 = vmatprep.subr.bf16.mxu0 0
    %114 = vmatpush1.bf16.msra.mxu0 0
    %115 = vmatprep.subr.bf16.mxu0 0
    %116 = vmatpush1.bf16.msra.mxu0 0
    %117 = vmatprep.subr.bf16.mxu0 0
    %118 = vmatpush1.bf16.msra.mxu0 0
    %119 = vmatprep.subr.bf16.mxu0 0
    %120 = vmatpush1.bf16.msra.mxu0 0
    %121 = vmatprep.subr.bf16.mxu0 0
    %122 = vmatpush1.bf16.msra.mxu0 0
    %123 = vmatprep.subr.bf16.mxu0 0
    %124 = vmatpush1.bf16.msra.mxu0 0
    %125 = vmatprep.mubr.bf16.mxu0 0
    %126 = vmatmul.mubr.bf16.gmra.mrb[0].mxu0 %v91
    %v127 = vpop.f32.mrb[0].mxu0
    %v128 = vadd.f32 %v72, %v127
    %v129 = vpop.f32.mrb[0].mxu0
    %v130 = vadd.f32 %v76, %v129
    %v131 = vpop.f32.mrb[0].mxu0
    %v132 = vpop.f32.mrb[0].mxu0
    %133 = vdwg.mxu0
    %v134 = vmax.f32 %v128, 0.0
    %v135 = vmax.f32 %v130, 0.0
    %v136 = vpack.c.bf16 %v134, %v134
    %v137 = vpack.c.bf16 %v135, %v135
    %v138 = vld [vmem:[#allocation3] sm:$0xff]
    %v139 = vld [vmem:[#allocation3 + $0x8] sm:$0xff]
    %v140 = vld [vmem:[#allocation3 + $0x10] sm:$0xff]
    %v141 = vld [vmem:[#allocation3 + $0x18] sm:$0xff]
    %v142 = vld [vmem:[#allocation3 + $0x20] sm:$0xff]
    %v143 = vld [vmem:[#allocation3 + $0x28] sm:$0xff]
    %v144 = vld [vmem:[#allocation3 + $0x30] sm:$0xff]
    %v145 = vld [vmem:[#allocation3 + $0x38] sm:$0xff]
    %v146 = vld [vmem:[#allocation3 + $0x40] sm:$0xff]
    %v147 = vld [vmem:[#allocation3 + $0x48] sm:$0xff]
    %v148 = vld [vmem:[#allocation3 + $0x50] sm:$0xff]
    %v149 = vld [vmem:[#allocation3 + $0x58] sm:$0xff]
    %v150 = vld [vmem:[#allocation3 + $0x60] sm:$0xff]
    %v151 = vld [vmem:[#allocation3 + $0x68] sm:$0xff]
    %v152 = vld [vmem:[#allocation3 + $0x70] sm:$0xff]
    %v153 = vld [vmem:[#allocation3 + $0x78] sm:$0xff]
    %v154 = vld [vmem:[#allocation3 + $0x80] sm:$0xff]
    %v155 = vld [vmem:[#allocation3 + $0x88] sm:$0xff]
    %v156 = vld [vmem:[#allocation3 + $0x90] sm:$0xff]
    %v157 = vld [vmem:[#allocation3 + $0x98] sm:$0xff]
    %v158 = vld [vmem:[#allocation3 + $0xa0] sm:$0xff]
    %v159 = vld [vmem:[#allocation3 + $0xa8] sm:$0xff]
    %v160 = vld [vmem:[#allocation3 + $0xb0] sm:$0xff]
    %v161 = vld [vmem:[#allocation3 + $0xb8] sm:$0xff]
    %v162 = vld [vmem:[#allocation3 + $0xc0] sm:$0xff]
    %v163 = vld [vmem:[#allocation3 + $0xc8] sm:$0xff]
    %v164 = vld [vmem:[#allocation3 + $0xd0] sm:$0xff]
    %v165 = vld [vmem:[#allocation3 + $0xd8] sm:$0xff]
    %v166 = vld [vmem:[#allocation3 + $0xe0] sm:$0xff]
    %v167 = vld [vmem:[#allocation3 + $0xe8] sm:$0xff]
    %v168 = vld [vmem:[#allocation3 + $0xf0] sm:$0xff]
    %v169 = vld [vmem:[#allocation3 + $0xf8] sm:$0xff]
    %v170 = vld [vmem:[%s6] sm:$0x3]
    %v172 = vlaneseq
    %v173 = vshrl.u32 %v172, 7
    %v174 = vsub.s32 0, %v173
    %v175 = vrot.slane %v170, %v174
    %v176 = vlaneseq
    %v177 = vshrl.u32 %v176, 7
    %v178 = vsub.s32 1, %v177
    %v179 = vrot.slane %v170, %v178
    %v214 = vunpack.c.l.b16 %v138
    %v215 = vunpack.c.h.b16 %v138
    %v216 = vunpack.c.l.b16 %v139
    %v217 = vunpack.c.h.b16 %v139
    %v218 = vunpack.c.l.b16 %v140
    %v219 = vunpack.c.h.b16 %v140
    %v220 = vunpack.c.l.b16 %v141
    %v221 = vunpack.c.h.b16 %v141
    %v222 = vunpack.c.l.b16 %v142
    %v223 = vunpack.c.h.b16 %v142
    %v224 = vunpack.c.l.b16 %v143
    %v225 = vunpack.c.h.b16 %v143
    %v226 = vunpack.c.l.b16 %v144
    %v227 = vunpack.c.h.b16 %v144
    %v228 = vunpack.c.l.b16 %v145
    %v229 = vunpack.c.h.b16 %v145
    %v230 = vunpack.c.l.b16 %v146
    %v231 = vunpack.c.h.b16 %v146
    %v232 = vunpack.c.l.b16 %v147
    %v233 = vunpack.c.h.b16 %v147
    %v234 = vunpack.c.l.b16 %v148
    %v235 = vunpack.c.h.b16 %v148
    %v236 = vunpack.c.l.b16 %v149
    %v237 = vunpack.c.h.b16 %v149
    %v238 = vunpack.c.l.b16 %v150
    %v239 = vunpack.c.h.b16 %v150
    %v240 = vunpack.c.l.b16 %v151
    %v241 = vunpack.c.h.b16 %v151
    %v242 = vunpack.c.l.b16 %v152
    %v243 = vunpack.c.h.b16 %v152
    %v244 = vunpack.c.l.b16 %v153
    %v245 = vunpack.c.h.b16 %v153
    %v246 = vunpack.c.l.b16 %v154
    %v247 = vunpack.c.h.b16 %v154
    %v248 = vunpack.c.l.b16 %v155
    %v249 = vunpack.c.h.b16 %v155
    %v250 = vunpack.c.l.b16 %v156
    %v251 = vunpack.c.h.b16 %v156
    %v252 = vunpack.c.l.b16 %v157
    %v253 = vunpack.c.h.b16 %v157
    %v254 = vunpack.c.l.b16 %v158
    %v255 = vunpack.c.h.b16 %v158
    %v256 = vunpack.c.l.b16 %v159
    %v257 = vunpack.c.h.b16 %v159
    %v258 = vunpack.c.l.b16 %v160
    %v259 = vunpack.c.h.b16 %v160
    %v260 = vunpack.c.l.b16 %v161
    %v261 = vunpack.c.h.b16 %v161
    %v262 = vunpack.c.l.b16 %v162
    %v263 = vunpack.c.h.b16 %v162
    %v264 = vunpack.c.l.b16 %v163
    %v265 = vunpack.c.h.b16 %v163
    %v266 = vunpack.c.l.b16 %v164
    %v267 = vunpack.c.h.b16 %v164
    %v268 = vunpack.c.l.b16 %v165
    %v269 = vunpack.c.h.b16 %v165
    %v270 = vunpack.c.l.b16 %v166
    %v271 = vunpack.c.h.b16 %v166
    %v272 = vunpack.c.l.b16 %v167
    %v273 = vunpack.c.h.b16 %v167
    %v274 = vunpack.c.l.b16 %v168
    %v275 = vunpack.c.h.b16 %v168
    %v276 = vunpack.c.l.b16 %v169
    %v277 = vunpack.c.h.b16 %v169
    %v278 = vpack.c.b16 %v216, %v214
    %v279 = vpack.c.b16 %v217, %v215
    %v280 = vpack.c.b16 %v220, %v218
    %v281 = vpack.c.b16 %v221, %v219
    %v282 = vpack.c.b16 %v224, %v222
    %v283 = vpack.c.b16 %v225, %v223
    %v284 = vpack.c.b16 %v228, %v226
    %v285 = vpack.c.b16 %v229, %v227
    %v286 = vpack.c.b16 %v232, %v230
    %v287 = vpack.c.b16 %v233, %v231
    %v288 = vpack.c.b16 %v236, %v234
    %v289 = vpack.c.b16 %v237, %v235
    %v290 = vpack.c.b16 %v240, %v238
    %v291 = vpack.c.b16 %v241, %v239
    %v292 = vpack.c.b16 %v244, %v242
    %v293 = vpack.c.b16 %v245, %v243
    %v294 = vpack.c.b16 %v248, %v246
    %v295 = vpack.c.b16 %v249, %v247
    %v296 = vpack.c.b16 %v252, %v250
    %v297 = vpack.c.b16 %v253, %v251
    %v298 = vpack.c.b16 %v256, %v254
    %v299 = vpack.c.b16 %v257, %v255
    %v300 = vpack.c.b16 %v260, %v258
    %v301 = vpack.c.b16 %v261, %v259
    %v302 = vpack.c.b16 %v264, %v262
    %v303 = vpack.c.b16 %v265, %v263
    %v304 = vpack.c.b16 %v268, %v266
    %v305 = vpack.c.b16 %v269, %v267
    %v306 = vpack.c.b16 %v272, %v270
    %v307 = vpack.c.b16 %v273, %v271
    %v308 = vpack.c.b16 %v276, %v274
    %v309 = vpack.c.b16 %v277, %v275
    %342 = vmatprep.subr.bf16.mxu0 %v279
    %343 = vmatpush1.bf16.msra.mxu0 %v278
    %344 = vmatprep.subr.bf16.mxu0 %v281
    %345 = vmatpush1.bf16.msra.mxu0 %v280
    %346 = vmatprep.subr.bf16.mxu0 %v283
    %347 = vmatpush1.bf16.msra.mxu0 %v282
    %348 = vmatprep.subr.bf16.mxu0 %v285
    %349 = vmatpush1.bf16.msra.mxu0 %v284
    %350 = vmatprep.subr.bf16.mxu0 %v287
    %351 = vmatpush1.bf16.msra.mxu0 %v286
    %352 = vmatprep.subr.bf16.mxu0 %v289
    %353 = vmatpush1.bf16.msra.mxu0 %v288
    %354 = vmatprep.subr.bf16.mxu0 %v291
    %355 = vmatpush1.bf16.msra.mxu0 %v290
    %356 = vmatprep.subr.bf16.mxu0 %v293
    %357 = vmatpush1.bf16.msra.mxu0 %v292
    %358 = vmatprep.subr.bf16.mxu0 %v295
    %359 = vmatpush1.bf16.msra.mxu0 %v294
    %360 = vmatprep.subr.bf16.mxu0 %v297
    %361 = vmatpush1.bf16.msra.mxu0 %v296
    %362 = vmatprep.subr.bf16.mxu0 %v299
    %363 = vmatpush1.bf16.msra.mxu0 %v298
    %364 = vmatprep.subr.bf16.mxu0 %v301
    %365 = vmatpush1.bf16.msra.mxu0 %v300
    %366 = vmatprep.subr.bf16.mxu0 %v303
    %367 = vmatpush1.bf16.msra.mxu0 %v302
    %368 = vmatprep.subr.bf16.mxu0 %v305
    %369 = vmatpush1.bf16.msra.mxu0 %v304
    %370 = vmatprep.subr.bf16.mxu0 %v307
    %371 = vmatpush1.bf16.msra.mxu0 %v306
    %372 = vmatprep.subr.bf16.mxu0 %v309
    %373 = vmatpush1.bf16.msra.mxu0 %v308
    %374 = vmatprep.mubr.bf16.mxu0 %v137
    %375 = vmatmul.mubr.bf16.gmra.mrb[0].mxu0 %v136
    %v376 = vpop.f32.mrb[0].mxu0
    %v377 = vadd.f32 %v175, %v376
    %v378 = vpop.f32.mrb[0].mxu0
    %v379 = vadd.f32 %v179, %v378
    %v380 = vpop.f32.mrb[0].mxu0
    %v381 = vpop.f32.mrb[0].mxu0
    %382 = vdwg.mxu0
    %v383 = vmax.f32 %v377, 0.0
    %v384 = vmax.f32 %v379, 0.0
    %v385 = vpack.c.bf16 %v383, %v383
    %v386 = vpack.c.bf16 %v384, %v384
    %v387 = vld [vmem:[%s7] sm:$0xf]
    %v388 = vld [vmem:[%s7 + $0x4] sm:$0xf]
    %v389 = vld [vmem:[%s7 + $0x8] sm:$0xf]
    %v390 = vld [vmem:[%s7 + $0xc] sm:$0xf]
    %v391 = vld [vmem:[%s7 + $0x10] sm:$0xf]
    %v392 = vld [vmem:[%s7 + $0x14] sm:$0xf]
    %v393 = vld [vmem:[%s7 + $0x18] sm:$0xf]
    %v394 = vld [vmem:[%s7 + $0x1c] sm:$0xf]
    %v395 = vld [vmem:[%s7 + $0x20] sm:$0xf]
    %v396 = vld [vmem:[%s7 + $0x24] sm:$0xf]
    %v397 = vld [vmem:[%s7 + $0x28] sm:$0xf]
    %v398 = vld [vmem:[%s7 + $0x2c] sm:$0xf]
    %v399 = vld [vmem:[%s7 + $0x30] sm:$0xf]
    %v400 = vld [vmem:[%s7 + $0x34] sm:$0xf]
    %v401 = vld [vmem:[%s7 + $0x38] sm:$0xf]
    %v402 = vld [vmem:[%s7 + $0x3c] sm:$0xf]
    %v403 = vld [vmem:[%s7 + $0x40] sm:$0xf]
    %v404 = vld [vmem:[%s7 + $0x44] sm:$0xf]
    %v405 = vld [vmem:[%s7 + $0x48] sm:$0xf]
    %v406 = vld [vmem:[%s7 + $0x4c] sm:$0xf]
    %v407 = vld [vmem:[%s7 + $0x50] sm:$0xf]
    %v408 = vld [vmem:[%s7 + $0x54] sm:$0xf]
    %v409 = vld [vmem:[%s7 + $0x58] sm:$0xf]
    %v410 = vld [vmem:[%s7 + $0x5c] sm:$0xf]
    %v411 = vld [vmem:[%s7 + $0x60] sm:$0xf]
    %v412 = vld [vmem:[%s7 + $0x64] sm:$0xf]
    %v413 = vld [vmem:[%s7 + $0x68] sm:$0xf]
    %v414 = vld [vmem:[%s7 + $0x6c] sm:$0xf]
    %v415 = vld [vmem:[%s7 + $0x70] sm:$0xf]
    %v416 = vld [vmem:[%s7 + $0x74] sm:$0xf]
    %v417 = vld [vmem:[%s7 + $0x78] sm:$0xf]
    %v418 = vld [vmem:[%s7 + $0x7c] sm:$0xf]
    %v419 = vld [vmem:[%s8] sm:$0x1]
    %v421 = vlaneseq
    %v422 = vshrl.u32 %v421, 7
    %v423 = vsub.s32 0, %v422
    %v424 = vrot.slane %v419, %v423
    %v458 = vunpack.c.l.b16 %v387
    %v459 = vunpack.c.l.b16 %v388
    %v460 = vunpack.c.l.b16 %v389
    %v461 = vunpack.c.l.b16 %v390
    %v462 = vunpack.c.l.b16 %v391
    %v463 = vunpack.c.l.b16 %v392
    %v464 = vunpack.c.l.b16 %v393
    %v465 = vunpack.c.l.b16 %v394
    %v466 = vunpack.c.l.b16 %v395
    %v467 = vunpack.c.l.b16 %v396
    %v468 = vunpack.c.l.b16 %v397
    %v469 = vunpack.c.l.b16 %v398
    %v470 = vunpack.c.l.b16 %v399
    %v471 = vunpack.c.l.b16 %v400
    %v472 = vunpack.c.l.b16 %v401
    %v473 = vunpack.c.l.b16 %v402
    %v474 = vunpack.c.l.b16 %v403
    %v475 = vunpack.c.l.b16 %v404
    %v476 = vunpack.c.l.b16 %v405
    %v477 = vunpack.c.l.b16 %v406
    %v478 = vunpack.c.l.b16 %v407
    %v479 = vunpack.c.l.b16 %v408
    %v480 = vunpack.c.l.b16 %v409
    %v481 = vunpack.c.l.b16 %v410
    %v482 = vunpack.c.l.b16 %v411
    %v483 = vunpack.c.l.b16 %v412
    %v484 = vunpack.c.l.b16 %v413
    %v485 = vunpack.c.l.b16 %v414
    %v486 = vunpack.c.l.b16 %v415
    %v487 = vunpack.c.l.b16 %v416
    %v488 = vunpack.c.l.b16 %v417
    %v489 = vunpack.c.l.b16 %v418
    %v490 = vpack.c.b16 %v459, %v458
    %v491 = vpack.c.b16 %v461, %v460
    %v492 = vpack.c.b16 %v463, %v462
    %v493 = vpack.c.b16 %v465, %v464
    %v494 = vpack.c.b16 %v467, %v466
    %v495 = vpack.c.b16 %v469, %v468
    %v496 = vpack.c.b16 %v471, %v470
    %v497 = vpack.c.b16 %v473, %v472
    %v498 = vpack.c.b16 %v475, %v474
    %v499 = vpack.c.b16 %v477, %v476
    %v500 = vpack.c.b16 %v479, %v478
    %v501 = vpack.c.b16 %v481, %v480
    %v502 = vpack.c.b16 %v483, %v482
    %v503 = vpack.c.b16 %v485, %v484
    %v504 = vpack.c.b16 %v487, %v486
    %v505 = vpack.c.b16 %v489, %v488
    %522 = vmatprep.subr.bf16.mxu0 0
    %523 = vmatpush1.bf16.msra.mxu0 %v490
    %524 = vmatprep.subr.bf16.mxu0 0
    %525 = vmatpush1.bf16.msra.mxu0 %v491
    %526 = vmatprep.subr.bf16.mxu0 0
    %527 = vmatpush1.bf16.msra.mxu0 %v492
    %528 = vmatprep.subr.bf16.mxu0 0
    %529 = vmatpush1.bf16.msra.mxu0 %v493
    %530 = vmatprep.subr.bf16.mxu0 0
    %531 = vmatpush1.bf16.msra.mxu0 %v494
    %532 = vmatprep.subr.bf16.mxu0 0
    %533 = vmatpush1.bf16.msra.mxu0 %v495
    %534 = vmatprep.subr.bf16.mxu0 0
    %535 = vmatpush1.bf16.msra.mxu0 %v496
    %536 = vmatprep.subr.bf16.mxu0 0
    %537 = vmatpush1.bf16.msra.mxu0 %v497
    %538 = vmatprep.subr.bf16.mxu0 0
    %539 = vmatpush1.bf16.msra.mxu0 %v498
    %540 = vmatprep.subr.bf16.mxu0 0
    %541 = vmatpush1.bf16.msra.mxu0 %v499
    %542 = vmatprep.subr.bf16.mxu0 0
    %543 = vmatpush1.bf16.msra.mxu0 %v500
    %544 = vmatprep.subr.bf16.mxu0 0
    %545 = vmatpush1.bf16.msra.mxu0 %v501
    %546 = vmatprep.subr.bf16.mxu0 0
    %547 = vmatpush1.bf16.msra.mxu0 %v502
    %548 = vmatprep.subr.bf16.mxu0 0
    %549 = vmatpush1.bf16.msra.mxu0 %v503
    %550 = vmatprep.subr.bf16.mxu0 0
    %551 = vmatpush1.bf16.msra.mxu0 %v504
    %552 = vmatprep.subr.bf16.mxu0 0
    %553 = vmatpush1.bf16.msra.mxu0 %v505
    %554 = vmatprep.mubr.bf16.mxu0 %v386
    %555 = vmatmul.mubr.bf16.gmra.mrb[0].mxu0 %v385
    %v556 = vpop.f32.mrb[0].mxu0
    %v557 = vadd.f32 %v424, %v556
    %v558 = vpop.f32.mrb[0].mxu0
    %v559 = vpop.f32.mrb[0].mxu0
    %v560 = vpop.f32.mrb[0].mxu0
    %561 = vdwg.mxu0
    %v562 = vtanh.pop %v557
    %v563 = vadd.f32 %v562, 1.0
    %v564 = vmul.f32 %v563, 12.0
    %v565 = vmul.f32 %v564, 0.5
    %v566 = vadd.f32 %v565, -10.0
    %v567 = vmul.f32 %v566, 1.442695
    %v568 = vpow.pop %v567
    %v569 = vld [vmem:[%s2] sm:$0xff]
    %571 = vrot.lane.b32.xlu0 %v569, 4
    %v572 = vpop.permute.xlu0 %571
    %v574 = vmul.f32 %v568, %v572
    %576 = vrot.lane.b32.xlu0 %v574, 124
    %v577 = vpop.permute.xlu0 %576
    %v579 = vadd.f32 %v557, %v577
    %v580 = vmul.f32 %v569, -0.5
    %v581 = vmul.f32 %v580, %v569
    %583 = vrot.lane.b32.xlu0 %v566, 124
    %v584 = vpop.permute.xlu0 %583
    %v586 = vsub.f32 %v581, %v584
    %v587 = vsub.f32 %v586, 0.9189385
    %v588 = vsub.f32 0.6931472, %v579
    %v589 = vmul.f32 %v579, -2.0
    %v590 = vmax.f32 %v589, 0.0
    %v591 = vand.u32 2147483647, %v589
    %v592 = vsub.f32 0.0, %v591
    %v593 = vmul.f32 %v592, 1.442695
    %v594 = vpow.pop %v593
    %v595 = vadd.f32 %v594, 1.0
    %v596 = vlog2.pop %v595
    %v597 = vmul.f32 %v596, 0.6931472
    %v598 = vmul.f32 -0.5, %v594
    %v599 = vadd.f32 %v598, 1.0
    %v600 = vmul.f32 %v599, %v594
    %v601 = vand.u32 2147483647, %v594
    %vm602 = vcmp.lt.f32.partialorder %v601, 0.0004427343
    %v603 = vsel %vm602, %v600, %v597
    %v604 = vadd.f32 %v590, %v603
    %v605 = vsub.f32 %v588, %v604
    %v606 = vmul.f32 %v605, 2.0
    %v607 = vsub.f32 %v587, %v606
    %vm608 = vcmask 31744
    %v609 = vsel %vm608, %v607, 0.0
    %610 = vadd.xlane.f32.xlu0 %v609
    %v611 = vpop.xlane.xlu0 %610
    %v612 = vld [vmem:[%s9] sm:$0x1]
    %v613 = vtanh.pop %v579
    %v614 = vld [vmem:[%s10] sm:$0x1]
    %v616 = vlaneseq
    %v617 = vshrl.u32 %v616, 7
    %v618 = vsub.s32 0, %v617
    %v619 = vrot.slane %v614, %v618
    %v621 = vmul.f32 %v613, %v619
    %v623 = vlaneseq
    %v624 = vshrl.u32 %v623, 7
    %v625 = vsub.s32 0, %v624
    %v626 = vrot.slane %v612, %v625
    %v628 = vadd.f32 %v626, %v621
    %629 = vst.msk [vmem:[%s11] sm:$0xff] %vm608, %v628
    %vm630 = vcmask 39968
    %631 = vst.msk [vmem:[%s11] sm:$0xff] %vm630, %v611
    // Predicated region
    $region50: #{sac_actor_forward.1} parent=1 // pred_check
      _
    $region51: #{sac_actor_forward.1} parent=1 // pred_check_branch
      %633 = sbr.rel (0) target = $region53
    $region52: #{sac_actor_forward.1} parent=1 // pred_region
      _
    $region53: #{sac_actor_forward.1} parent=1 // pred_fallthru
      _
    // Predicated region
    $region54: #{sac_actor_forward.1} parent=1 // pred_check
      _
    $region55: #{sac_actor_forward.1} parent=1 // pred_check_branch
      %635 = sbr.rel (0) target = $region57
    $region56: #{sac_actor_forward.1} parent=1 // pred_region
      _
    $region57: #{sac_actor_forward.1} parent=1 // pred_fallthru
      _
    %636 = vsyncpa [#allocation4], 1

</llo_original>
